<compile_context>
chip_gen: v6e
topology: v6e:2x2x1
jax: 0.10.0
libtpu: 0.0.40
codegen_flags: <defaults>
</compile_context>

<pallas_src>
import functools
import math

import jax
import jax.numpy as jnp
from jax.experimental import pallas as pl
from jax.experimental.pallas import tpu as pltpu


_SQRT_2_OVER_PI = 0.7978845608028654


def _gelu_tanh(x):
    # tanh-approximate GELU (EUP tanh; keeps the VALU free).
    # TODO(synk): HF ACT2FN["gelu"] is the exact erf-based GELU; the tanh
    # approximation (deviation <~1e-3) is used for portable Mosaic lowering.
    return 0.5 * x * (1.0 + jnp.tanh(_SQRT_2_OVER_PI * (x + 0.044715 * x * x * x)))


def _row_block(m, block_m=512):
    return m if m <= block_m else block_m


# ---------------------------------------------------------------------------
# Kernel 1: fused  y = x @ W + b  (+ optional GELU epilogue)
# ---------------------------------------------------------------------------
def _linear_kernel(x_ref, w_ref, b_ref, o_ref, *, gelu):
    y = jnp.dot(x_ref[...], w_ref[...], preferred_element_type=jnp.float32)
    y = y + b_ref[...].astype(jnp.float32)
    if gelu:
        y = _gelu_tanh(y)
    o_ref[...] = y.astype(o_ref.dtype)


def linear(x, w, b, *, gelu=False):
    M, K = x.shape
    Kw, N = w.shape
    assert K == Kw and b.shape == (1, N)
    tm = _row_block(M)
    return pl.pallas_call(
        functools.partial(_linear_kernel, gelu=gelu),
        out_shape=jax.ShapeDtypeStruct((M, N), x.dtype),
        grid_spec=pltpu.PrefetchScalarGridSpec(
            num_scalar_prefetch=0,
            grid=(pl.cdiv(M, tm),),
            in_specs=[
                pl.BlockSpec((tm, K), lambda i: (i, 0)),   # activations (row tile)
                pl.BlockSpec((K, N), lambda i: (0, 0)),    # weight (resident)
                pl.BlockSpec((1, N), lambda i: (0, 0)),    # bias
            ],
            out_specs=pl.BlockSpec((tm, N), lambda i: (i, 0)),
        ),
        compiler_params=pltpu.CompilerParams(
            dimension_semantics=("parallel",)),
    )(x, w, b)


# ---------------------------------------------------------------------------
# Kernel 2: fused  LayerNorm(x @ W + b + residual) * gamma + beta
#   (ProSSTSelfOutput / ProSSTOutput; dropout is identity at inference)
# ---------------------------------------------------------------------------
def _linear_residual_layernorm_kernel(x_ref, w_ref, b_ref, res_ref,
                                      g_ref, beta_ref, o_ref, *, eps):
    y = jnp.dot(x_ref[...], w_ref[...], preferred_element_type=jnp.float32)
    y = y + b_ref[...].astype(jnp.float32)
    h = y + res_ref[...].astype(jnp.float32)
    mean = jnp.mean(h, axis=-1, keepdims=True)
    var = jnp.mean(jnp.square(h - mean), axis=-1, keepdims=True)
    hn = (h - mean) * jax.lax.rsqrt(var + jnp.float32(eps))
    out = g_ref[...].astype(jnp.float32) * hn + beta_ref[...].astype(jnp.float32)
    o_ref[...] = out.astype(o_ref.dtype)


def linear_residual_layernorm(x, w, b, residual, gamma, beta, *, eps):
    M, K = x.shape
    Kw, N = w.shape
    assert K == Kw and residual.shape == (M, N)
    tm = _row_block(M)
    return pl.pallas_call(
        functools.partial(_linear_residual_layernorm_kernel, eps=eps),
        out_shape=jax.ShapeDtypeStruct((M, N), x.dtype),
        grid_spec=pltpu.PrefetchScalarGridSpec(
            num_scalar_prefetch=0,
            grid=(pl.cdiv(M, tm),),
            in_specs=[
                pl.BlockSpec((tm, K), lambda i: (i, 0)),   # x (row tile)
                pl.BlockSpec((K, N), lambda i: (0, 0)),    # W
                pl.BlockSpec((1, N), lambda i: (0, 0)),    # bias
                pl.BlockSpec((tm, N), lambda i: (i, 0)),   # residual (row tile)
                pl.BlockSpec((1, N), lambda i: (0, 0)),    # LN gamma
                pl.BlockSpec((1, N), lambda i: (0, 0)),    # LN beta
            ],
            out_specs=pl.BlockSpec((tm, N), lambda i: (i, 0)),
        ),
        compiler_params=pltpu.CompilerParams(
            dimension_semantics=("parallel",)),
    )(x, w, b, residual, gamma, beta)


# ---------------------------------------------------------------------------
# Kernel 3: multi-head attention core (per batch element, all heads at once)
#   probs = softmax(masked_fill(q k^T, -inf)); masked_fill(probs, 0); ctx = probs v
# ---------------------------------------------------------------------------
def _mha_kernel(q_ref, k_ref, v_ref, mask_ref, o_ref, *, scale):
    q = q_ref[0].astype(jnp.float32) * jnp.float32(scale)   # (nh, L, d)
    k = k_ref[0].astype(jnp.float32)                        # (nh, L, d)
    v = v_ref[0].astype(jnp.float32)                        # (nh, L, d)
    keep = mask_ref[0][None, :, :] > 0                      # (1, L, L), bool

    scores = jnp.einsum('hqd,hkd->hqk', q, k,
                        preferred_element_type=jnp.float32)  # (nh, L, L)
    scores = jnp.where(keep, scores, -jnp.inf)

    # softmax along the lane (key) axis
    mx = jnp.max(scores, axis=-1, keepdims=True)
    e = jnp.exp(scores - mx)
    s = jnp.sum(e, axis=-1, keepdims=True)
    # masked_fill(rmask, 0.0) after softmax — also makes fully-masked query rows 0
    probs = jnp.where(keep, e / s, 0.0)

    ctx = jnp.einsum('hqk,hkd->hqd', probs, v,
                     preferred_element_type=jnp.float32)     # (nh, L, d)
    o_ref[0] = ctx.astype(o_ref.dtype)


def mha_attention(q, k, v, ext_mask, *, scale):
    B, nh, L, d = q.shape
    assert ext_mask.shape == (B, L, L)
    qkv_spec = pl.BlockSpec((1, nh, L, d), lambda b: (b, 0, 0, 0))
    return pl.pallas_call(
        functools.partial(_mha_kernel, scale=scale),
        out_shape=jax.ShapeDtypeStruct((B, nh, L, d), q.dtype),
        grid_spec=pltpu.PrefetchScalarGridSpec(
            num_scalar_prefetch=0,
            grid=(B,),
            in_specs=[
                qkv_spec,
                pl.BlockSpec((1, nh, L, d), lambda b: (b, 0, 0, 0)),
                pl.BlockSpec((1, nh, L, d), lambda b: (b, 0, 0, 0)),
                pl.BlockSpec((1, L, L), lambda b: (b, 0, 0)),
            ],
            out_specs=pl.BlockSpec((1, nh, L, d), lambda b: (b, 0, 0, 0)),
        ),
        compiler_params=pltpu.CompilerParams(
            dimension_semantics=("parallel",)),
    )(q, k, v, ext_mask)


# ---------------------------------------------------------------------------
# Full ProSSTLayer forward (wrapper)
# ---------------------------------------------------------------------------
def prosst_layer_forward(hidden_states, attention_mask, params, *,
                         num_heads, eps=1e-12):
    """hidden_states: (B, L, H) f32; attention_mask: (B, L) {0,1}."""
    B, L, H = hidden_states.shape
    d = H // num_heads
    x2 = hidden_states.reshape(B * L, H)

    # fused QKV projection
    qkv = linear(x2, params["qkv_w"], params["qkv_b"])          # (B*L, 3H)
    q, k, v = jnp.split(qkv, 3, axis=-1)

    def to_heads(t):
        return t.reshape(B, L, num_heads, d).transpose(0, 2, 1, 3)  # (B, nh, L, d)

    # DeBERTa-style extended mask: token valid for both query and key position
    ext_mask = (attention_mask[:, :, None] *
                attention_mask[:, None, :]).astype(jnp.float32)      # (B, L, L)

    # scale_factor = 1 + len(pos_att_type) = 1  -> scale = sqrt(head_dim)
    scale = 1.0 / math.sqrt(float(d))
    ctx = mha_attention(to_heads(q), to_heads(k), to_heads(v), ext_mask, scale=scale)
    ctx2 = ctx.transpose(0, 2, 1, 3).reshape(B * L, H)

    # ProSSTSelfOutput: LayerNorm(dense(ctx) + hidden)
    attn_out = linear_residual_layernorm(
        ctx2, params["attn_out_w"], params["attn_out_b"], x2,
        params["ln1_g"], params["ln1_b"], eps=eps)

    # ProSSTIntermediate: gelu(dense(attn_out))
    inter = linear(attn_out, params["inter_w"], params["inter_b"], gelu=True)

    # ProSSTOutput: LayerNorm(dense(inter) + attn_out)
    layer_out = linear_residual_layernorm(
        inter, params["out_w"], params["out_b"], attn_out,
        params["ln2_g"], params["ln2_b"], eps=eps)

    return layer_out.reshape(B, L, H)


# ---------------------------------------------------------------------------
# Plain-JAX reference mirroring the PyTorch forward (default config path)
# ---------------------------------------------------------------------------
def prosst_layer_reference(hidden_states, attention_mask, params, *,
                           num_heads, eps=1e-12):
    B, L, H = hidden_states.shape
    d = H // num_heads
    x2 = hidden_states.reshape(B * L, H)

    qkv = x2 @ params["qkv_w"] + params["qkv_b"][0]
    q, k, v = jnp.split(qkv, 3, axis=-1)

    def to_heads(t):
        return t.reshape(B, L, num_heads, d).transpose(0, 2, 1, 3)

    qh, kh, vh = to_heads(q), to_heads(k), to_heads(v)
    qh = qh / jnp.sqrt(jnp.float32(d))
    scores = jnp.einsum('bhqd,bhkd->bhqk', qh, kh)

    ext = (attention_mask[:, :, None] * attention_mask[:, None, :]) > 0
    rmask = ~ext[:, None, :, :]
    scores = jnp.where(rmask, -jnp.inf, scores)
    probs = jax.nn.softmax(scores, axis=-1)
    probs = jnp.where(rmask, 0.0, probs)          # torch: masked_fill(rmask, 0.0)
    ctx = jnp.einsum('bhqk,bhkd->bhqd', probs, vh)
    ctx2 = ctx.transpose(0, 2, 1, 3).reshape(B * L, H)

    def layernorm(h, g, b):
        mean = h.mean(-1, keepdims=True)
        var = ((h - mean) ** 2).mean(-1, keepdims=True)
        return g[0] * ((h - mean) / jnp.sqrt(var + eps)) + b[0]

    attn_dense = ctx2 @ params["attn_out_w"] + params["attn_out_b"][0]
    attn_out = layernorm(attn_dense + x2, params["ln1_g"], params["ln1_b"])

    inter = _gelu_tanh(attn_out @ params["inter_w"] + params["inter_b"][0])
    out_dense = inter @ params["out_w"] + params["out_b"][0]
    out = layernorm(out_dense + attn_out, params["ln2_g"], params["ln2_b"])
    return out.reshape(B, L, H)


def init_params(key, hidden, intermediate):
    # Weights stored as (in, out) (i.e. the transpose of torch Linear.weight).
    ks = jax.random.split(key, 12)
    s = 0.05

    def w(k, i, o):
        return jax.random.normal(k, (i, o), jnp.float32) * s

    def b(k, o):
        return jax.random.normal(k, (1, o), jnp.float32) * s

    return {
        "qkv_w": w(ks[0], hidden, 3 * hidden), "qkv_b": b(ks[1], 3 * hidden),
        "attn_out_w": w(ks[2], hidden, hidden), "attn_out_b": b(ks[3], hidden),
        "ln1_g": 1.0 + 0.1 * jax.random.normal(ks[4], (1, hidden), jnp.float32),
        "ln1_b": 0.1 * jax.random.normal(ks[5], (1, hidden), jnp.float32),
        "inter_w": w(ks[6], hidden, intermediate), "inter_b": b(ks[7], intermediate),
        "out_w": w(ks[8], intermediate, hidden), "out_b": b(ks[9], hidden),
        "ln2_g": 1.0 + 0.1 * jax.random.normal(ks[10], (1, hidden), jnp.float32),
        "ln2_b": 0.1 * jax.random.normal(ks[11], (1, hidden), jnp.float32),
    }


if __name__ == "__main__":
    key = jax.random.PRNGKey(0)
    k_h, k_p = jax.random.split(key)

    # batch=2, seq=16, hidden=32, heads=4 (head_dim=8), intermediate=64
    B, L, H, NH, I = 2, 16, 32, 4, 64
    hidden_states = jax.random.normal(k_h, (B, L, H), dtype=jnp.float32)
    # padding mask: second sequence has its last 4 positions masked out
    attention_mask = jnp.ones((B, L), jnp.float32).at[1, L - 4:].set(0.0)
    params = init_params(k_p, H, I)

    out = prosst_layer_forward(hidden_states, attention_mask, params,
                               num_heads=NH, eps=1e-12)
    out = jax.block_until_ready(out)

    ref = prosst_layer_reference(hidden_states, attention_mask, params,
                                 num_heads=NH, eps=1e-12)
    assert out.shape == (B, L, H)
    # tolerance covers MXU default-precision matmul rounding
    assert jnp.allclose(out, ref, atol=1e-3, rtol=1e-3), (
        float(jnp.max(jnp.abs(out - ref))))

    print("KERNEL_OK")
</pallas_src>

<mosaic_0001>
module attributes {stable_mosaic.version = 11 : i64} {
  func.func @_linear_kernel(%arg0: i32, %arg1: memref<32x32xf32, #tpu.memory_space<vmem>>, %arg2: memref<32x96xf32, #tpu.memory_space<vmem>>, %arg3: memref<1x96xf32, #tpu.memory_space<vmem>>, %arg4: memref<32x96xf32, #tpu.memory_space<vmem>>) attributes {dimension_semantics = [#tpu.dimension_semantics<parallel>], iteration_bounds = array<i64: 1>, scalar_prefetch = 0 : i64, scratch_operands = 0 : i64, tpu.core_type = #tpu.core_type<tc>, window_params = [{transform_indices = @transform_0, window_bounds = array<i64: 32, 32>}, {pipeline_mode = #tpu.pipeline_mode<synchronous>, transform_indices = @transform_1, window_bounds = array<i64: 32, 96>}, {pipeline_mode = #tpu.pipeline_mode<synchronous>, transform_indices = @transform_2, window_bounds = array<i64: 1, 96>}, {transform_indices = @transform_3, window_bounds = array<i64: 32, 96>}]} {
    %c0 = arith.constant 0 : index
    %c0_0 = arith.constant 0 : index
    %0 = vector.load %arg1[%c0, %c0_0] : memref<32x32xf32, #tpu.memory_space<vmem>>, vector<32x32xf32>
    %c0_1 = arith.constant 0 : index
    %c0_2 = arith.constant 0 : index
    %1 = vector.load %arg2[%c0_1, %c0_2] : memref<32x96xf32, #tpu.memory_space<vmem>>, vector<32x96xf32>
    %cst = arith.constant dense<0.000000e+00> : vector<32x96xf32>
    %2 = tpu.matmul %0, %1, %cst {dimension_numbers = #tpu.dot_dimension_numbers<[1], [0], [0], [1], [0, 0, 1, 1], [], []>} : vector<32x32xf32>, vector<32x96xf32>, vector<32x96xf32> -> vector<32x96xf32>
    %c0_3 = arith.constant 0 : index
    %c0_4 = arith.constant 0 : index
    %3 = vector.load %arg3[%c0_3, %c0_4] : memref<1x96xf32, #tpu.memory_space<vmem>>, vector<1x96xf32>
    %4 = vector.broadcast %3 : vector<1x96xf32> to vector<32x96xf32>
    %5 = arith.addf %2, %4 : vector<32x96xf32>
    %c0_5 = arith.constant 0 : index
    %c0_6 = arith.constant 0 : index
    %6 = vector.load %arg4[%c0_5, %c0_6] : memref<32x96xf32, #tpu.memory_space<vmem>>, vector<32x96xf32>
    tpu.vector_store %arg4[%c0_5, %c0_6], %5 {strides = array<i32>} : memref<32x96xf32, #tpu.memory_space<vmem>>, vector<32x96xf32>,
    return
  }
  func.func @transform_0(%arg0: i32) -> (i32, i32) {
    %c0_i32 = arith.constant 0 : i32
    %c0_i32_0 = arith.constant 0 : i32
    return %arg0, %c0_i32 : i32, i32
  }
  func.func @transform_1(%arg0: i32) -> (i32, i32) {
    %c0_i32 = arith.constant 0 : i32
    %c0_i32_0 = arith.constant 0 : i32
    %c0_i32_1 = arith.constant 0 : i32
    return %c0_i32, %c0_i32_0 : i32, i32
  }
  func.func @transform_2(%arg0: i32) -> (i32, i32) {
    %c0_i32 = arith.constant 0 : i32
    %c0_i32_0 = arith.constant 0 : i32
    %c0_i32_1 = arith.constant 0 : i32
    return %c0_i32, %c0_i32_0 : i32, i32
  }
  func.func @transform_3(%arg0: i32) -> (i32, i32) {
    %c0_i32 = arith.constant 0 : i32
    %c0_i32_0 = arith.constant 0 : i32
    return %arg0, %c0_i32 : i32, i32
  }
}

</mosaic_0001>

<llo_original>
// kernel: tpu_custom_call.1
$region0: #{tpu_custom_call.1}
  #allocation0 [shape = 'u32[]', space=smem, size = 0x4, offset = 0x4, fixed_abs, tag = 'smem constant byte address 0x4 - core index']
  #allocation1 [shape = 'u32[144,128]{1,0:T(1,128)}', space=vmem, size = 0x12000, scoped, tag = 'internal scratch']
  %s0 = inlined_call_operand.hbm [shape: f32[32,32], index: 0, kind: input, shape index: {}]
  %s1 = inlined_call_operand.hbm [shape: f32[32,96], index: 1, kind: input, shape index: {}]
  %s2 = inlined_call_operand.vmem [shape: f32[1,96], index: 2, kind: input, shape index: {}]
  %s3 = inlined_call_operand.hbm [shape: f32[32,96], index: 3, kind: output, shape index: {}]
  %s4 = sld [smem:[#allocation0]]
  $region30: #{tpu_custom_call.1} parent=0
    _
  %s6 = ssub.s32 1, %s4
  %s7 = scalar_select 0, %s6, %s4
  $region1: #{tpu_custom_call.1} parent=0
    #allocation2 [shape = 'u8[16384]{0}', space=vmem, size = 0x4000, scoped, tag = 'input window, operand 0, single buffered']
    #allocation3 [shape = 's32[1]{0}', space=sflag, size = 0x4, scoped, tag = 'scoped memory for tpu_custom_call.1']
    #allocation4 [shape = 's32[1]{0}', space=sflag, size = 0x4, scoped, tag = 'scoped memory for tpu_custom_call.1']
    #allocation5 [shape = 'u8[16384]{0}', space=vmem, size = 0x4000, scoped, tag = 'input window, operand 1, single buffered']
    #allocation6 [shape = 's32[1]{0}', space=sflag, size = 0x4, scoped, tag = 'scoped memory for tpu_custom_call.1']
    #allocation7 [shape = 'u8[16384]{0}', space=vmem, size = 0x4000, scoped, tag = 'output window, operand 0, single buffered']
    %8 = vsyncpa [#allocation3], 0
    %9 = vsyncpa [#allocation6], 0
    %10 = vsyncpa [#allocation4], 0
    // Predicated region
    $region2: #{tpu_custom_call.1} parent=1 // pred_check
      _
    $region3: #{tpu_custom_call.1} parent=1 // pred_check_branch
      %12 = sbr.rel (0) target = $region5
    $region4: #{tpu_custom_call.1} parent=1 // pred_region
      %s14 = ssub.s32 512, 512
      %15 = vsyncadd [#allocation3], %s14
      %s16 = sshll.u32 [#allocation2], 4
      %s17 = int_to_ptr.vmem [resolvable:$true] %s16
      %22 = dma.hbm_to_vmem [thread:$0]  %s0, 512, %s17, [#allocation3], 128, 128, 8
    $region5: #{tpu_custom_call.1} parent=1 // pred_fallthru
      _
    // Predicated region
    $region6: #{tpu_custom_call.1} parent=1 // pred_check
      _
    $region7: #{tpu_custom_call.1} parent=1 // pred_check_branch
      %24 = sbr.rel (0) target = $region9
    $region8: #{tpu_custom_call.1} parent=1 // pred_region
      %s26 = ssub.s32 512, 512
      %27 = vsyncadd [#allocation6], %s26
      %s28 = sshll.u32 [#allocation5], 4
      %s29 = int_to_ptr.vmem [resolvable:$true] %s28
      %34 = dma.hbm_to_vmem [thread:$0]  %s1, 512, %s29, [#allocation6], 128, 128, 8
    $region9: #{tpu_custom_call.1} parent=1 // pred_fallthru
      _
    // Predicated region
    $region10: #{tpu_custom_call.1} parent=1 // pred_check
      _
    $region11: #{tpu_custom_call.1} parent=1 // pred_check_branch
      %36 = sbr.rel (0) target = $region13
    $region12: #{tpu_custom_call.1} parent=1 // pred_region
      _
    $region13: #{tpu_custom_call.1} parent=1 // pred_fallthru
      _
    // Predicated region
    $region14: #{tpu_custom_call.1} parent=1 // pred_check
      _
    $region15: #{tpu_custom_call.1} parent=1 // pred_check_branch
      %38 = sbr.rel (0) target = $region17
    $region16: #{tpu_custom_call.1} parent=1 // pred_region
      %39 = dma.done [#allocation3], 512
    $region17: #{tpu_custom_call.1} parent=1 // pred_fallthru
      _
    // Predicated region
    $region18: #{tpu_custom_call.1} parent=1 // pred_check
      _
    $region19: #{tpu_custom_call.1} parent=1 // pred_check_branch
      %41 = sbr.rel (0) target = $region21
    $region20: #{tpu_custom_call.1} parent=1 // pred_region
      %42 = dma.done [#allocation6], 512
    $region21: #{tpu_custom_call.1} parent=1 // pred_fallthru
      _
    %v43 = vld [vmem:[#allocation2] sm:$0xff]
    %v44 = vld [vmem:[#allocation2 + $0x8] sm:$0xff]
    %v45 = vld [vmem:[#allocation2 + $0x10] sm:$0xff]
    %v46 = vld [vmem:[#allocation2 + $0x18] sm:$0xff]
    %v47 = vld [vmem:[#allocation5] sm:$0xff]
    %v48 = vld [vmem:[#allocation5 + $0x8] sm:$0xff]
    %v49 = vld [vmem:[#allocation5 + $0x10] sm:$0xff]
    %v50 = vld [vmem:[#allocation5 + $0x18] sm:$0xff]
    %v51 = vld [vmem:[%s2] sm:$0x1]
    %v53 = vlaneseq
    %v54 = vshrl.u32 %v53, 7
    %v55 = vsub.s32 0, %v54
    %v56 = vrot.slane %v51, %v55
    %vm58 = vcmask 261120
    %v60 = vsel %vm58, %v43, 0
    %v63 = vsel %vm58, %v44, 0
    %v66 = vsel %vm58, %v45, 0
    %v69 = vsel %vm58, %v46, 0
    %71 = vmatprep.subr.mxu0 0.0
    %72 = vmatpush1.msra.mxu0 0.0
    %73 = vmatprep.subr.mxu0 0.0
    %74 = vmatpush1.msra.mxu0 0.0
    %75 = vmatprep.subr.mxu0 0.0
    %76 = vmatpush1.msra.mxu0 0.0
    %77 = vmatprep.subr.mxu0 0.0
    %78 = vmatpush1.msra.mxu0 0.0
    %79 = vmatprep.subr.mxu0 0.0
    %80 = vmatpush1.msra.mxu0 0.0
    %81 = vmatprep.subr.mxu0 0.0
    %82 = vmatpush1.msra.mxu0 0.0
    %83 = vmatprep.subr.mxu0 0.0
    %84 = vmatpush1.msra.mxu0 0.0
    %85 = vmatprep.subr.mxu0 0.0
    %86 = vmatpush1.msra.mxu0 0.0
    %87 = vmatprep.subr.mxu0 0.0
    %88 = vmatpush1.msra.mxu0 0.0
    %89 = vmatprep.subr.mxu0 0.0
    %90 = vmatpush1.msra.mxu0 0.0
    %91 = vmatprep.subr.mxu0 0.0
    %92 = vmatpush1.msra.mxu0 0.0
    %93 = vmatprep.subr.mxu0 0.0
    %94 = vmatpush1.msra.mxu0 0.0
    %95 = vmatprep.subr.mxu0 0.0
    %96 = vmatpush1.msra.mxu0 %v50
    %97 = vmatprep.subr.mxu0 0.0
    %98 = vmatpush1.msra.mxu0 %v49
    %99 = vmatprep.subr.mxu0 0.0
    %100 = vmatpush1.msra.mxu0 %v48
    %101 = vmatprep.subr.mxu0 0.0
    %102 = vmatpush1.msra.mxu0 %v47
    %103 = vmatprep.subr.mxu0 0.0
    %104 = vmatpush2.msra.mxu0 0.0
    %105 = vmatprep.subr.mxu0 0.0
    %106 = vmatpush2.msra.mxu0 0.0
    %107 = vmatprep.subr.mxu0 0.0
    %108 = vmatpush2.msra.mxu0 0.0
    %109 = vmatprep.subr.mxu0 0.0
    %110 = vmatpush2.msra.mxu0 0.0
    %111 = vmatprep.subr.mxu0 0.0
    %112 = vmatpush2.msra.mxu0 0.0
    %113 = vmatprep.subr.mxu0 0.0
    %114 = vmatpush2.msra.mxu0 0.0
    %115 = vmatprep.subr.mxu0 0.0
    %116 = vmatpush2.msra.mxu0 0.0
    %117 = vmatprep.subr.mxu0 0.0
    %118 = vmatpush2.msra.mxu0 0.0
    %119 = vmatprep.subr.mxu0 0.0
    %120 = vmatpush2.msra.mxu0 0.0
    %121 = vmatprep.subr.mxu0 0.0
    %122 = vmatpush2.msra.mxu0 0.0
    %123 = vmatprep.subr.mxu0 0.0
    %124 = vmatpush2.msra.mxu0 0.0
    %125 = vmatprep.subr.mxu0 0.0
    %126 = vmatpush2.msra.mxu0 0.0
    %127 = vmatprep.subr.mxu0 0.0
    %128 = vmatpush2.msra.mxu0 0.0
    %129 = vmatprep.subr.mxu0 0.0
    %130 = vmatpush2.msra.mxu0 0.0
    %131 = vmatprep.subr.mxu0 0.0
    %132 = vmatpush2.msra.mxu0 0.0
    %133 = vmatprep.subr.mxu0 0.0
    %134 = vmatpush2.msra.mxu0 0.0
    %135 = vmatprep.mubr.f32.mxu0 0.0
    %136 = vmatmul.mubr.f32.gmra.mxu0 %v60
    %v137 = vpop.f32.mrf.mxu0
    %v138 = vadd.f32 %v56, %v137
    %v139 = vpop.f32.mrf.mxu0
    %140 = vmatprep.mubr.f32.mxu0 0.0
    %141 = vmatmul.mubr.f32.gmra.mxu0 %v63
    %v142 = vpop.f32.mrf.mxu0
    %v143 = vadd.f32 %v56, %v142
    %v144 = vpop.f32.mrf.mxu0
    %145 = vmatprep.mubr.f32.mxu0 0.0
    %146 = vmatmul.mubr.f32.gmra.mxu0 %v66
    %v147 = vpop.f32.mrf.mxu0
    %v148 = vadd.f32 %v56, %v147
    %v149 = vpop.f32.mrf.mxu0
    %150 = vmatprep.mubr.f32.mxu0 0.0
    %151 = vmatmul.mubr.f32.gmra.mxu0 %v69
    %v152 = vpop.f32.mrf.mxu0
    %v153 = vadd.f32 %v56, %v152
    %v154 = vpop.f32.mrf.mxu0
    %155 = vdwg.mxu0
    %vm156 = vcmask 785408
    %157 = vst.msk [vmem:[#allocation7] sm:$0xff] %vm156, %v138
    %158 = vst.msk [vmem:[#allocation7 + $0x8] sm:$0xff] %vm156, %v143
    %159 = vst.msk [vmem:[#allocation7 + $0x10] sm:$0xff] %vm156, %v148
    %160 = vst.msk [vmem:[#allocation7 + $0x18] sm:$0xff] %vm156, %v153
    // Predicated region
    $region22: #{tpu_custom_call.1} parent=1 // pred_check
      _
    $region23: #{tpu_custom_call.1} parent=1 // pred_check_branch
      %162 = sbr.rel (0) target = $region25
    $region24: #{tpu_custom_call.1} parent=1 // pred_region
      %s164 = ssub.s32 512, 512
      %165 = vsyncadd [#allocation4], %s164
      %s166 = sshll.u32 [#allocation7], 4
      %s167 = int_to_ptr.vmem [resolvable:$true] %s166
      %172 = dma.vmem_to_hbm [thread:$0]  %s167, 512, %s3, [#allocation4], 128, 128, 8
    $region25: #{tpu_custom_call.1} parent=1 // pred_fallthru
      _
    // Predicated region
    $region26: #{tpu_custom_call.1} parent=1 // pred_check
      _
    $region27: #{tpu_custom_call.1} parent=1 // pred_check_branch
      %174 = sbr.rel (0) target = $region29
    $region28: #{tpu_custom_call.1} parent=1 // pred_region
      %175 = dma.done [#allocation4], 512
    $region29: #{tpu_custom_call.1} parent=1 // pred_fallthru
      _
    %176 = vsyncpa [#allocation3], 1
    %177 = vsyncpa [#allocation6], 1
    %178 = vsyncpa [#allocation4], 1

</llo_original>
